<compile_context>
chip_gen: v7x
topology: tpu7x:2x2x1
jax: 0.10.0
libtpu: 0.0.40
codegen_flags: <defaults>
</compile_context>

<pallas_src>
import functools

import jax
import jax.numpy as jnp
from jax.experimental import pallas as pl
from jax.experimental.pallas import tpu as pltpu

EPS = 1e-5


def _round_up(v, m):
    return (v + m - 1) // m * m


def _tpu_defaults():
    """Generation-aware (tile_h, vmem_limit_bytes) defaults."""
    kind = ""
    try:
        kind = jax.devices()[0].device_kind.lower()
    except Exception:
        pass
    if "v7" in kind:                    # 64 MiB physical VMEM, 256-wide MXU
        return 256, 48 * 1024 * 1024
    if "v6" in kind:                    # 128 MiB VMEM, 256-wide MXU
        return 256, 96 * 1024 * 1024
    if "v5" in kind:                    # v5e/v5p: 128-wide MXU, 128 MiB VMEM
        return 128, 96 * 1024 * 1024
    return 128, 48 * 1024 * 1024        # unknown / older: conservative


def _bn_train(v, inv_n, gamma, beta):
    """Training-mode BatchNorm1d, one-pass (sum, sum-of-squares) stats, all f32.

    Note: E[x^2]-E[x]^2 can cancel for data with huge mean/spread ratio; fine
    at these scales in f32 and guarded with maximum(., 0).
    """
    mu = jnp.sum(v, axis=0, keepdims=True) * inv_n
    m2 = jnp.sum(v * v, axis=0, keepdims=True) * inv_n
    var = jnp.maximum(m2 - mu * mu, 0.0)
    return (v - mu) * jax.lax.rsqrt(var + EPS) * gamma + beta


# --------------------------------------------------------------------------- #
# Single-step fused kernel: whole (padded) problem resident in VMEM.
# --------------------------------------------------------------------------- #
def _bottleneck1d_fused_kernel(x_ref, w1_ref, bn1_ref, w2_ref, bn2_ref, o_ref,
                               *, n_real, n_pad, compute_dtype):
    x = x_ref[...]                                           # (Np, Dp) f32
    inv_n = jnp.float32(1.0 / n_real)

    # Linear1 (bias dropped: exactly cancelled by training-mode BN mean subtraction).
    h = jnp.dot(x.astype(compute_dtype), w1_ref[...],
                preferred_element_type=jnp.float32)          # (Np, Hp) f32
    h = _bn_train(h, inv_n, bn1_ref[0:1, :], bn1_ref[1:2, :])
    h = jnp.maximum(h, 0.0)                                  # ReLU
    if n_real < n_pad:
        # Zero padded batch rows so they don't pollute BN2 statistics
        # (static branch; runs at most once — not inside any grid loop).
        row_ids = jax.lax.broadcasted_iota(jnp.int32, h.shape, 0)
        h = jnp.where(row_ids < n_real, h, 0.0)

    y = jnp.dot(h.astype(compute_dtype), w2_ref[...],
                preferred_element_type=jnp.float32)          # (Np, Dp) f32
    y = _bn_train(y, inv_n, bn2_ref[0:1, :], bn2_ref[1:2, :])
    o_ref[...] = (x + y).astype(o_ref.dtype)                 # residual, lane-dense store


# --------------------------------------------------------------------------- #
# Hidden-tile grid kernel for large H: Linear2 partials accumulate directly
# into the resident f32 output block; BN2 + residual run on the last step.
# --------------------------------------------------------------------------- #
def _bottleneck1d_tiled_kernel(x_ref, xmm_ref, w1_ref, bn1_ref, w2_ref, bn2_ref,
                               mask_ref, o_ref, *, n_real, compute_dtype):
    k = pl.program_id(0)
    nk = pl.num_programs(0)
    inv_n = jnp.float32(1.0 / n_real)

    # Linear1 on this hidden tile (LHS pre-cast once in the wrapper, resident).
    h = jnp.dot(xmm_ref[...], w1_ref[...], preferred_element_type=jnp.float32)
    # BN stats are per-feature, so per-tile BN1 is exact.
    h = _bn_train(h, inv_n, bn1_ref[0:1, :], bn1_ref[1:2, :])
    h = jnp.maximum(h, 0.0)
    # Precomputed (Np, 1) batch-row mask: a single vmul, no per-step iota/cmp/select.
    h = h * mask_ref[...]

    # Linear2 partial product, accumulated directly into the output block
    # (no separate accumulator scratch).
    part = jnp.dot(h.astype(compute_dtype), w2_ref[...],
                   preferred_element_type=jnp.float32)

    @pl.when(k == 0)
    def _():
        o_ref[...] = part

    @pl.when(k > 0)
    def _():
        o_ref[...] += part

    # Finalize: BatchNorm1d on y, residual add, lane-dense store.
    @pl.when(k == nk - 1)
    def _():
        y = _bn_train(o_ref[...], inv_n, bn2_ref[0:1, :], bn2_ref[1:2, :])
        o_ref[...] = (x_ref[...] + y).astype(o_ref.dtype)


def bottleneck1d(x, params, *, tile_h=None, compute_dtype=jnp.float32,
                 single_step_max_h=512):
    """x: (N, D) float32. params: dict from init_params (PyTorch-equivalent).

    compute_dtype=jnp.bfloat16 uses bf16 MXU inputs with f32 accumulation; this
    is valid on v5e as well (all BN/ReLU math stays in f32 on the VPU).
    """
    assert x.dtype == jnp.float32, "Linear2 accumulates in the f32 output block"
    n, d = x.shape
    h_dim = params["w1"].shape[1]

    def_tile_h, vmem_limit = _tpu_defaults()
    if tile_h is None:
        tile_h = def_tile_h
    assert tile_h % 128 == 0, "tile_h must be a multiple of 128 (lane width)"

    n_pad = _round_up(n, 8)             # f32 sublane tiling
    d_pad = _round_up(d, 128)           # lane-dense feature dims
    h_pad_min = _round_up(h_dim, 128)
    single_step = h_pad_min <= max(single_step_max_h, tile_h)
    h_pad = h_pad_min if single_step else _round_up(h_dim, tile_h)

    # Zero-padding is exact: padded rows/cols carry zeros through the
    # (bias-free) matmuls and padded BN columns map to 0 (gamma = beta = 0).
    xp = jnp.pad(x, ((0, n_pad - n), (0, d_pad - d)))
    w1 = jnp.pad(params["w1"], ((0, d_pad - d), (0, h_pad - h_dim))).astype(compute_dtype)
    w2 = jnp.pad(params["w2"], ((0, h_pad - h_dim), (0, d_pad - d))).astype(compute_dtype)
    # gamma/beta packed as (2, F): half the per-step DMA descriptors.
    bn1 = jnp.concatenate([
        jnp.pad(params["g1"], ((0, 0), (0, h_pad - h_dim))),
        jnp.pad(params["be1"], ((0, 0), (0, h_pad - h_dim))),
    ], axis=0)
    bn2 = jnp.concatenate([
        jnp.pad(params["g2"], ((0, 0), (0, d_pad - d))),
        jnp.pad(params["be2"], ((0, 0), (0, d_pad - d))),
    ], axis=0)

    out_shape = jax.ShapeDtypeStruct((n_pad, d_pad), jnp.float32)

    if single_step:
        vmem_full = pl.BlockSpec(memory_space=pltpu.MemorySpace.VMEM)
        kernel = functools.partial(_bottleneck1d_fused_kernel,
                                   n_real=n, n_pad=n_pad, compute_dtype=compute_dtype)
        out_p = pl.pallas_call(
            kernel,
            out_shape=out_shape,
            in_specs=[vmem_full] * 5,
            out_specs=vmem_full,
            compiler_params=pltpu.CompilerParams(vmem_limit_bytes=vmem_limit),
        )(xp, w1, bn1, w2, bn2)
    else:
        n_steps = h_pad // tile_h
        xmm = xp.astype(compute_dtype)                        # hoisted matmul-LHS cast
        mask = (jnp.arange(n_pad) < n).astype(jnp.float32).reshape(n_pad, 1)

        # Deeper weight-stream buffering only when the grid is long enough to
        # expose W1/W2 DMA (a no-op at short grids).
        w_pipe = dict(pipeline_mode=pl.Buffered(3)) if n_steps >= 4 else {}

        kernel = functools.partial(_bottleneck1d_tiled_kernel,
                                   n_real=n, compute_dtype=compute_dtype)
        out_p = pl.pallas_call(
            kernel,
            out_shape=out_shape,
            grid=(n_steps,),
            in_specs=[
                pl.BlockSpec((n_pad, d_pad), lambda k: (0, 0)),             # x f32 (residual, resident)
                pl.BlockSpec((n_pad, d_pad), lambda k: (0, 0)),             # x in compute dtype (resident)
                pl.BlockSpec((d_pad, tile_h), lambda k: (0, k), **w_pipe),  # W1 column tile
                pl.BlockSpec((2, tile_h), lambda k: (0, k)),                # gamma1/beta1 tile
                pl.BlockSpec((tile_h, d_pad), lambda k: (k, 0), **w_pipe),  # W2 row tile
                pl.BlockSpec((2, d_pad), lambda k: (0, 0)),                 # gamma2/beta2 (resident)
                pl.BlockSpec((n_pad, 1), lambda k: (0, 0)),                 # batch-row mask (resident)
            ],
            out_specs=pl.BlockSpec((n_pad, d_pad), lambda k: (0, 0)),       # resident output/accumulator
            compiler_params=pltpu.CompilerParams(
                dimension_semantics=("arbitrary",),   # hidden-tile axis is a reduction
                vmem_limit_bytes=vmem_limit,
            ),
        )(xp, xmm, w1, bn1, w2, bn2, mask)

    return out_p[:n, :d]


# --------------------------------------------------------------------------- #
# Parameters and pure-JAX references
# --------------------------------------------------------------------------- #
def init_params(key, input_dim, expand=5):
    hidden = expand * input_dim
    ks = jax.random.split(key, 8)
    # Linear weights stored pre-transposed: (in_features, out_features)
    w1 = jax.random.normal(ks[0], (input_dim, hidden), jnp.float32) * 0.05
    b1 = jax.random.normal(ks[1], (1, hidden), jnp.float32) * 0.05
    w2 = jax.random.normal(ks[2], (hidden, input_dim), jnp.float32) * 0.05
    b2 = jax.random.normal(ks[3], (1, input_dim), jnp.float32) * 0.05
    # BatchNorm affine params
    g1 = 1.0 + 0.1 * jax.random.normal(ks[4], (1, hidden), jnp.float32)
    be1 = 0.1 * jax.random.normal(ks[5], (1, hidden), jnp.float32)
    g2 = 1.0 + 0.1 * jax.random.normal(ks[6], (1, input_dim), jnp.float32)
    be2 = 0.1 * jax.random.normal(ks[7], (1, input_dim), jnp.float32)
    # b1/b2 kept for the reference; the kernel omits them (training-mode BN mean
    # subtraction cancels them exactly — NOT valid for eval-mode/running-stat BN).
    return dict(w1=w1, b1=b1, g1=g1, be1=be1, w2=w2, b2=b2, g2=g2, be2=be2)


def _ref_bn(v, g, b):
    mu = v.mean(0, keepdims=True)
    var = ((v - mu) ** 2).mean(0, keepdims=True)
    return (v - mu) / jnp.sqrt(var + EPS) * g + b


def reference(x, p):
    """Pure-JAX reference of the PyTorch forward (training-mode BN, with biases)."""
    h = x @ p["w1"] + p["b1"]
    h = jnp.maximum(_ref_bn(h, p["g1"], p["be1"]), 0.0)
    y = h @ p["w2"] + p["b2"]
    return x + _ref_bn(y, p["g2"], p["be2"])


def reference_bf16(x, p):
    """Reference with bf16 matmul inputs / f32 accumulation (matches compute_dtype=bf16)."""
    w1 = p["w1"].astype(jnp.bfloat16)
    w2 = p["w2"].astype(jnp.bfloat16)
    h = jnp.dot(x.astype(jnp.bfloat16), w1, preferred_element_type=jnp.float32) + p["b1"]
    h = jnp.maximum(_ref_bn(h, p["g1"], p["be1"]), 0.0)
    y = jnp.dot(h.astype(jnp.bfloat16), w2, preferred_element_type=jnp.float32) + p["b2"]
    return x + _ref_bn(y, p["g2"], p["be2"])


if __name__ == "__main__":
    key = jax.random.PRNGKey(0)
    kx, kp, kx2, kp2 = jax.random.split(key, 4)

    # ---- Shipped shape (N=8, D=32, H=160): single-step fused kernel path ----
    batch, input_dim, expand = 8, 32, 5
    x = jax.random.normal(kx, (batch, input_dim), jnp.float32)
    params = init_params(kp, input_dim, expand)
    ref = reference(x, params)

    out_f32 = jax.block_until_ready(bottleneck1d(x, params, compute_dtype=jnp.float32))
    assert out_f32.shape == (batch, input_dim)
    assert jnp.allclose(out_f32, ref, atol=1e-4, rtol=1e-4), "f32 fused kernel mismatch"

    # Non-multiple-of-8 batch (N=6 -> n_pad=8): padded-row masking still exact.
    out_pad = jax.block_until_ready(bottleneck1d(x[:6], params, compute_dtype=jnp.float32))
    assert jnp.allclose(out_pad, reference(x[:6], params), atol=1e-4, rtol=1e-4), \
        "f32 fused kernel mismatch (padded batch)"

    # bf16 MXU inputs / f32 accumulation (valid on v5e as well as v6e/v7x).
    out_bf16 = jax.block_until_ready(bottleneck1d(x, params, compute_dtype=jnp.bfloat16))
    assert jnp.allclose(out_bf16, reference_bf16(x, params), atol=2e-2, rtol=2e-2), \
        "bf16 kernel mismatch vs bf16-matmul reference"
    assert jnp.allclose(out_bf16, ref, atol=1e-1, rtol=1e-1), \
        "bf16 kernel mismatch vs f32 reference"

    # ---- Larger hidden dim (N=12, D=32, H=768): tiled accumulate-into-output path ----
    batch2, input_dim2, expand2 = 12, 32, 24
    x2 = jax.random.normal(kx2, (batch2, input_dim2), jnp.float32)
    params2 = init_params(kp2, input_dim2, expand2)
    out2 = jax.block_until_ready(
        bottleneck1d(x2, params2, tile_h=256, compute_dtype=jnp.float32))
    assert out2.shape == (batch2, input_dim2)
    assert jnp.allclose(out2, reference(x2, params2), atol=2e-3, rtol=2e-3), \
        "f32 tiled kernel mismatch"

    print("KERNEL_OK")
</pallas_src>

<mosaic_0001>
module attributes {stable_mosaic.version = 11 : i64} {
  func.func @_bottleneck1d_fused_kernel(%arg0: memref<8x128xf32, #tpu.memory_space<vmem>>, %arg1: memref<128x256xf32, #tpu.memory_space<vmem>>, %arg2: memref<2x256xf32, #tpu.memory_space<vmem>>, %arg3: memref<256x128xf32, #tpu.memory_space<vmem>>, %arg4: memref<2x128xf32, #tpu.memory_space<vmem>>, %arg5: memref<8x128xf32, #tpu.memory_space<vmem>>) attributes {dimension_semantics = [], scalar_prefetch = 0 : i64, scratch_operands = 0 : i64, tpu.core_type = #tpu.core_type<tc>} {
    %c0 = arith.constant 0 : index
    %c0_0 = arith.constant 0 : index
    %0 = vector.load %arg0[%c0, %c0_0] : memref<8x128xf32, #tpu.memory_space<vmem>>, vector<8x128xf32>
    %c0_1 = arith.constant 0 : index
    %c0_2 = arith.constant 0 : index
    %1 = vector.load %arg1[%c0_1, %c0_2] : memref<128x256xf32, #tpu.memory_space<vmem>>, vector<128x256xf32>
    %cst = arith.constant dense<0.000000e+00> : vector<8x256xf32>
    %2 = tpu.matmul %0, %1, %cst {dimension_numbers = #tpu.dot_dimension_numbers<[1], [0], [0], [1], [0, 0, 1, 1], [], []>} : vector<8x128xf32>, vector<128x256xf32>, vector<8x256xf32> -> vector<8x256xf32>
    %c0_3 = arith.constant 0 : index
    %c0_4 = arith.constant 0 : index
    %3 = vector.load %arg2[%c0_3, %c0_4] : memref<2x256xf32, #tpu.memory_space<vmem>>, vector<1x256xf32>
    %c1 = arith.constant 1 : index
    %c0_5 = arith.constant 0 : index
    %4 = vector.load %arg2[%c1, %c0_5] : memref<2x256xf32, #tpu.memory_space<vmem>>, vector<1x256xf32>
    %cst_6 = arith.constant dense<0.000000e+00> : vector<256xf32>
    %5 = vector.multi_reduction <add>, %2, %cst_6 [0] : vector<8x256xf32> to vector<256xf32>
    %6 = vector.shape_cast %5 : vector<256xf32> to vector<1x256xf32>
    %cst_7 = arith.constant 1.250000e-01 : f32
    %7 = vector.broadcast %cst_7 : f32 to vector<1x256xf32>
    %8 = arith.mulf %6, %7 : vector<1x256xf32>
    %9 = arith.mulf %2, %2 : vector<8x256xf32>
    %cst_8 = arith.constant dense<0.000000e+00> : vector<256xf32>
    %10 = vector.multi_reduction <add>, %9, %cst_8 [0] : vector<8x256xf32> to vector<256xf32>
    %11 = vector.shape_cast %10 : vector<256xf32> to vector<1x256xf32>
    %cst_9 = arith.constant 1.250000e-01 : f32
    %12 = vector.broadcast %cst_9 : f32 to vector<1x256xf32>
    %13 = arith.mulf %11, %12 : vector<1x256xf32>
    %14 = arith.mulf %8, %8 : vector<1x256xf32>
    %15 = arith.subf %13, %14 : vector<1x256xf32>
    %cst_10 = arith.constant 0.000000e+00 : f32
    %16 = vector.broadcast %cst_10 : f32 to vector<1x256xf32>
    %17 = arith.maximumf %15, %16 : vector<1x256xf32>
    %18 = vector.broadcast %8 : vector<1x256xf32> to vector<8x256xf32>
    %19 = arith.subf %2, %18 : vector<8x256xf32>
    %cst_11 = arith.constant 9.99999974E-6 : f32
    %20 = vector.broadcast %cst_11 : f32 to vector<1x256xf32>
    %21 = arith.addf %17, %20 : vector<1x256xf32>
    %22 = math.rsqrt %21 : vector<1x256xf32>
    %23 = vector.broadcast %22 : vector<1x256xf32> to vector<8x256xf32>
    %24 = arith.mulf %19, %23 : vector<8x256xf32>
    %25 = vector.broadcast %3 : vector<1x256xf32> to vector<8x256xf32>
    %26 = arith.mulf %24, %25 : vector<8x256xf32>
    %27 = vector.broadcast %4 : vector<1x256xf32> to vector<8x256xf32>
    %28 = arith.addf %26, %27 : vector<8x256xf32>
    %cst_12 = arith.constant 0.000000e+00 : f32
    %29 = vector.broadcast %cst_12 : f32 to vector<8x256xf32>
    %30 = arith.maximumf %28, %29 : vector<8x256xf32>
    %c0_13 = arith.constant 0 : index
    %c0_14 = arith.constant 0 : index
    %31 = vector.load %arg3[%c0_13, %c0_14] : memref<256x128xf32, #tpu.memory_space<vmem>>, vector<256x128xf32>
    %cst_15 = arith.constant dense<0.000000e+00> : vector<8x128xf32>
    %32 = tpu.matmul %30, %31, %cst_15 {dimension_numbers = #tpu.dot_dimension_numbers<[1], [0], [0], [1], [0, 0, 1, 1], [], []>} : vector<8x256xf32>, vector<256x128xf32>, vector<8x128xf32> -> vector<8x128xf32>
    %c0_16 = arith.constant 0 : index
    %c0_17 = arith.constant 0 : index
    %33 = vector.load %arg4[%c0_16, %c0_17] : memref<2x128xf32, #tpu.memory_space<vmem>>, vector<1x128xf32>
    %c1_18 = arith.constant 1 : index
    %c0_19 = arith.constant 0 : index
    %34 = vector.load %arg4[%c1_18, %c0_19] : memref<2x128xf32, #tpu.memory_space<vmem>>, vector<1x128xf32>
    %cst_20 = arith.constant dense<0.000000e+00> : vector<128xf32>
    %35 = vector.multi_reduction <add>, %32, %cst_20 [0] : vector<8x128xf32> to vector<128xf32>
    %36 = vector.shape_cast %35 : vector<128xf32> to vector<1x128xf32>
    %cst_21 = arith.constant 1.250000e-01 : f32
    %37 = vector.broadcast %cst_21 : f32 to vector<1x128xf32>
    %38 = arith.mulf %36, %37 : vector<1x128xf32>
    %39 = arith.mulf %32, %32 : vector<8x128xf32>
    %cst_22 = arith.constant dense<0.000000e+00> : vector<128xf32>
    %40 = vector.multi_reduction <add>, %39, %cst_22 [0] : vector<8x128xf32> to vector<128xf32>
    %41 = vector.shape_cast %40 : vector<128xf32> to vector<1x128xf32>
    %cst_23 = arith.constant 1.250000e-01 : f32
    %42 = vector.broadcast %cst_23 : f32 to vector<1x128xf32>
    %43 = arith.mulf %41, %42 : vector<1x128xf32>
    %44 = arith.mulf %38, %38 : vector<1x128xf32>
    %45 = arith.subf %43, %44 : vector<1x128xf32>
    %cst_24 = arith.constant 0.000000e+00 : f32
    %46 = vector.broadcast %cst_24 : f32 to vector<1x128xf32>
    %47 = arith.maximumf %45, %46 : vector<1x128xf32>
    %48 = vector.broadcast %38 : vector<1x128xf32> to vector<8x128xf32>
    %49 = arith.subf %32, %48 : vector<8x128xf32>
    %cst_25 = arith.constant 9.99999974E-6 : f32
    %50 = vector.broadcast %cst_25 : f32 to vector<1x128xf32>
    %51 = arith.addf %47, %50 : vector<1x128xf32>
    %52 = math.rsqrt %51 : vector<1x128xf32>
    %53 = vector.broadcast %52 : vector<1x128xf32> to vector<8x128xf32>
    %54 = arith.mulf %49, %53 : vector<8x128xf32>
    %55 = vector.broadcast %33 : vector<1x128xf32> to vector<8x128xf32>
    %56 = arith.mulf %54, %55 : vector<8x128xf32>
    %57 = vector.broadcast %34 : vector<1x128xf32> to vector<8x128xf32>
    %58 = arith.addf %56, %57 : vector<8x128xf32>
    %59 = arith.addf %0, %58 : vector<8x128xf32>
    %c0_26 = arith.constant 0 : index
    %c0_27 = arith.constant 0 : index
    %60 = vector.load %arg5[%c0_26, %c0_27] : memref<8x128xf32, #tpu.memory_space<vmem>>, vector<8x128xf32>
    tpu.vector_store %arg5[%c0_26, %c0_27], %59 {strides = array<i32>} : memref<8x128xf32, #tpu.memory_space<vmem>>, vector<8x128xf32>,
    return
  }
}

</mosaic_0001>

<llo_original>
// kernel: tpu_custom_call.1
$region0: #{tpu_custom_call.1}
  #allocation0 [shape = 'u32[]', space=smem, size = 0x4, offset = 0x4, fixed_abs, tag = 'smem constant byte address 0x4 - core index']
  #allocation1 [shape = 'u32[144,128]{1,0:T(1,128)}', space=vmem, size = 0x12000, scoped, tag = 'internal scratch']
  %s0 = inlined_call_operand.hbm [shape: f32[8,128], index: 0, kind: input, shape index: {}]
  %s1 = inlined_call_operand.hbm [shape: f32[128,256], index: 1, kind: input, shape index: {}]
  %s2 = inlined_call_operand.vmem [shape: f32[2,256], index: 2, kind: input, shape index: {}]
  %s3 = inlined_call_operand.hbm [shape: f32[256,128], index: 3, kind: input, shape index: {}]
  %s4 = inlined_call_operand.vmem [shape: f32[2,128], index: 4, kind: input, shape index: {}]
  %s5 = inlined_call_operand.hbm [shape: f32[8,128], index: 5, kind: output, shape index: {}]
  %s6 = sld [smem:[#allocation0]]
  $region42: #{tpu_custom_call.1} parent=0
    _
  %s8 = ssub.s32 1, %s6
  %s9 = scalar_select 0, %s8, %s6
  $region1: #{tpu_custom_call.1} parent=0
    #allocation2 [shape = 'u8[4096]{0}', space=vmem, size = 0x1000, scoped, tag = 'input window, operand 0, single buffered']
    #allocation3 [shape = 's32[1]{0}', space=sflag, size = 0x4, scoped, tag = 'scoped memory for tpu_custom_call.1']
    #allocation4 [shape = 's32[1]{0}', space=sflag, size = 0x4, scoped, tag = 'scoped memory for tpu_custom_call.1']
    #allocation5 [shape = 'u8[131072]{0}', space=vmem, size = 0x20000, scoped, tag = 'input window, operand 1, single buffered']
    #allocation6 [shape = 's32[1]{0}', space=sflag, size = 0x4, scoped, tag = 'scoped memory for tpu_custom_call.1']
    #allocation7 [shape = 'u8[131072]{0}', space=vmem, size = 0x20000, scoped, tag = 'input window, operand 3, single buffered']
    #allocation8 [shape = 'u8[4096]{0}', space=vmem, size = 0x1000, scoped, tag = 'output window, operand 0, single buffered']
    %10 = vsyncpa [#allocation3], 0
    %11 = vsyncpa [#allocation6], 0
    %12 = vsyncpa [#allocation4], 0
    // Predicated region
    $region2: #{tpu_custom_call.1} parent=1 // pred_check
      _
    $region3: #{tpu_custom_call.1} parent=1 // pred_check_branch
      %14 = sbr.rel (0) target = $region5
    $region4: #{tpu_custom_call.1} parent=1 // pred_region
      %s16 = ssub.s32 128, 128
      %17 = vsyncadd [#allocation3], %s16
      %s19 = sshll.u32 [#allocation2], 4
      %s20 = int_to_ptr.vmem [resolvable:$true] %s19
      %22 = dma.hbm_to_vmem [thread:$0]  %s0, 128, %s20, [#allocation3]
    $region5: #{tpu_custom_call.1} parent=1 // pred_fallthru
      _
    // Predicated region
    $region6: #{tpu_custom_call.1} parent=1 // pred_check
      _
    $region7: #{tpu_custom_call.1} parent=1 // pred_check_branch
      %24 = sbr.rel (0) target = $region9
    $region8: #{tpu_custom_call.1} parent=1 // pred_region
      %s26 = ssub.s32 4096, 4096
      %27 = vsyncadd [#allocation6], %s26
      %s28 = sshll.u32 [#allocation5], 4
      %s29 = int_to_ptr.vmem [resolvable:$true] %s28
      %34 = dma.hbm_to_vmem [thread:$0]  %s1, 4096, %s29, [#allocation6], 256, 256, 16
    $region9: #{tpu_custom_call.1} parent=1 // pred_fallthru
      _
    // Predicated region
    $region10: #{tpu_custom_call.1} parent=1 // pred_check
      _
    $region11: #{tpu_custom_call.1} parent=1 // pred_check_branch
      %36 = sbr.rel (0) target = $region13
    $region12: #{tpu_custom_call.1} parent=1 // pred_region
      _
    $region13: #{tpu_custom_call.1} parent=1 // pred_fallthru
      _
    // Predicated region
    $region14: #{tpu_custom_call.1} parent=1 // pred_check
      _
    $region15: #{tpu_custom_call.1} parent=1 // pred_check_branch
      %38 = sbr.rel (0) target = $region17
    $region16: #{tpu_custom_call.1} parent=1 // pred_region
      %s40 = ssub.s32 4096, 4096
      %41 = vsyncadd [#allocation6], %s40
      %s42 = sshll.u32 [#allocation7], 4
      %s43 = int_to_ptr.vmem [resolvable:$true] %s42
      %48 = dma.hbm_to_vmem [thread:$0]  %s3, 4096, %s43, [#allocation6], 128, 128, 8
    $region17: #{tpu_custom_call.1} parent=1 // pred_fallthru
      _
    // Predicated region
    $region18: #{tpu_custom_call.1} parent=1 // pred_check
      _
    $region19: #{tpu_custom_call.1} parent=1 // pred_check_branch
      %50 = sbr.rel (0) target = $region21
    $region20: #{tpu_custom_call.1} parent=1 // pred_region
      _
    $region21: #{tpu_custom_call.1} parent=1 // pred_fallthru
      _
    // Predicated region
    $region22: #{tpu_custom_call.1} parent=1 // pred_check
      _
    $region23: #{tpu_custom_call.1} parent=1 // pred_check_branch
      %52 = sbr.rel (0) target = $region25
    $region24: #{tpu_custom_call.1} parent=1 // pred_region
      %53 = dma.done [#allocation3], 128
    $region25: #{tpu_custom_call.1} parent=1 // pred_fallthru
      _
    // Predicated region
    $region26: #{tpu_custom_call.1} parent=1 // pred_check
      _
    $region27: #{tpu_custom_call.1} parent=1 // pred_check_branch
      %55 = sbr.rel (0) target = $region29
    $region28: #{tpu_custom_call.1} parent=1 // pred_region
      %56 = dma.done [#allocation6], 4096
    $region29: #{tpu_custom_call.1} parent=1 // pred_fallthru
      _
    // Predicated region
    $region30: #{tpu_custom_call.1} parent=1 // pred_check
      _
    $region31: #{tpu_custom_call.1} parent=1 // pred_check_branch
      %58 = sbr.rel (0) target = $region33
    $region32: #{tpu_custom_call.1} parent=1 // pred_region
      %59 = dma.done [#allocation6], 4096
    $region33: #{tpu_custom_call.1} parent=1 // pred_fallthru
      _
    %v60 = vld [vmem:[#allocation2] sm:$0xff]
    %v61 = vld [vmem:[#allocation5] sm:$0xff]
    %v62 = vld [vmem:[#allocation5 + $0x8] sm:$0xff]
    %v63 = vld [vmem:[#allocation5 + $0x10] sm:$0xff]
    %v64 = vld [vmem:[#allocation5 + $0x18] sm:$0xff]
    %v65 = vld [vmem:[#allocation5 + $0x20] sm:$0xff]
    %v66 = vld [vmem:[#allocation5 + $0x28] sm:$0xff]
    %v67 = vld [vmem:[#allocation5 + $0x30] sm:$0xff]
    %v68 = vld [vmem:[#allocation5 + $0x38] sm:$0xff]
    %v69 = vld [vmem:[#allocation5 + $0x40] sm:$0xff]
    %v70 = vld [vmem:[#allocation5 + $0x48] sm:$0xff]
    %v71 = vld [vmem:[#allocation5 + $0x50] sm:$0xff]
    %v72 = vld [vmem:[#allocation5 + $0x58] sm:$0xff]
    %v73 = vld [vmem:[#allocation5 + $0x60] sm:$0xff]
    %v74 = vld [vmem:[#allocation5 + $0x68] sm:$0xff]
    %v75 = vld [vmem:[#allocation5 + $0x70] sm:$0xff]
    %v76 = vld [vmem:[#allocation5 + $0x78] sm:$0xff]
    %v77 = vld [vmem:[#allocation5 + $0x80] sm:$0xff]
    %v78 = vld [vmem:[#allocation5 + $0x88] sm:$0xff]
    %v79 = vld [vmem:[#allocation5 + $0x90] sm:$0xff]
    %v80 = vld [vmem:[#allocation5 + $0x98] sm:$0xff]
    %v81 = vld [vmem:[#allocation5 + $0xa0] sm:$0xff]
    %v82 = vld [vmem:[#allocation5 + $0xa8] sm:$0xff]
    %v83 = vld [vmem:[#allocation5 + $0xb0] sm:$0xff]
    %v84 = vld [vmem:[#allocation5 + $0xb8] sm:$0xff]
    %v85 = vld [vmem:[#allocation5 + $0xc0] sm:$0xff]
    %v86 = vld [vmem:[#allocation5 + $0xc8] sm:$0xff]
    %v87 = vld [vmem:[#allocation5 + $0xd0] sm:$0xff]
    %v88 = vld [vmem:[#allocation5 + $0xd8] sm:$0xff]
    %v89 = vld [vmem:[#allocation5 + $0xe0] sm:$0xff]
    %v90 = vld [vmem:[#allocation5 + $0xe8] sm:$0xff]
    %v91 = vld [vmem:[#allocation5 + $0xf0] sm:$0xff]
    %v92 = vld [vmem:[#allocation5 + $0xf8] sm:$0xff]
    %93 = vmatprep.subr.mxu0 %v62
    %94 = vmatpush1.msra.mxu0 %v61
    %95 = vmatprep.subr.mxu0 %v64
    %96 = vmatpush1.msra.mxu0 %v63
    %97 = vmatprep.subr.mxu0 %v66
    %98 = vmatpush1.msra.mxu0 %v65
    %99 = vmatprep.subr.mxu0 %v68
    %100 = vmatpush1.msra.mxu0 %v67
    %101 = vmatprep.subr.mxu0 %v70
    %102 = vmatpush1.msra.mxu0 %v69
    %103 = vmatprep.subr.mxu0 %v72
    %104 = vmatpush1.msra.mxu0 %v71
    %105 = vmatprep.subr.mxu0 %v74
    %106 = vmatpush1.msra.mxu0 %v73
    %107 = vmatprep.subr.mxu0 %v76
    %108 = vmatpush1.msra.mxu0 %v75
    %109 = vmatprep.subr.mxu0 %v78
    %110 = vmatpush1.msra.mxu0 %v77
    %111 = vmatprep.subr.mxu0 %v80
    %112 = vmatpush1.msra.mxu0 %v79
    %113 = vmatprep.subr.mxu0 %v82
    %114 = vmatpush1.msra.mxu0 %v81
    %115 = vmatprep.subr.mxu0 %v84
    %116 = vmatpush1.msra.mxu0 %v83
    %117 = vmatprep.subr.mxu0 %v86
    %118 = vmatpush1.msra.mxu0 %v85
    %119 = vmatprep.subr.mxu0 %v88
    %120 = vmatpush1.msra.mxu0 %v87
    %121 = vmatprep.subr.mxu0 %v90
    %122 = vmatpush1.msra.mxu0 %v89
    %123 = vmatprep.subr.mxu0 %v92
    %124 = vmatpush1.msra.mxu0 %v91
    %125 = vmatprep.subr.mxu0 0.0
    %126 = vmatpush1.msra.mxu0 0.0
    %127 = vmatprep.subr.mxu0 0.0
    %128 = vmatpush1.msra.mxu0 0.0
    %129 = vmatprep.subr.mxu0 0.0
    %130 = vmatpush1.msra.mxu0 0.0
    %131 = vmatprep.subr.mxu0 0.0
    %132 = vmatpush1.msra.mxu0 0.0
    %133 = vmatprep.subr.mxu0 0.0
    %134 = vmatpush1.msra.mxu0 0.0
    %135 = vmatprep.subr.mxu0 0.0
    %136 = vmatpush1.msra.mxu0 0.0
    %137 = vmatprep.subr.mxu0 0.0
    %138 = vmatpush1.msra.mxu0 0.0
    %139 = vmatprep.subr.mxu0 0.0
    %140 = vmatpush1.msra.mxu0 0.0
    %141 = vmatprep.subr.mxu0 0.0
    %142 = vmatpush1.msra.mxu0 0.0
    %143 = vmatprep.subr.mxu0 0.0
    %144 = vmatpush1.msra.mxu0 0.0
    %145 = vmatprep.subr.mxu0 0.0
    %146 = vmatpush1.msra.mxu0 0.0
    %147 = vmatprep.subr.mxu0 0.0
    %148 = vmatpush1.msra.mxu0 0.0
    %149 = vmatprep.subr.mxu0 0.0
    %150 = vmatpush1.msra.mxu0 0.0
    %151 = vmatprep.subr.mxu0 0.0
    %152 = vmatpush1.msra.mxu0 0.0
    %153 = vmatprep.subr.mxu0 0.0
    %154 = vmatpush1.msra.mxu0 0.0
    %155 = vmatprep.subr.mxu0 0.0
    %156 = vmatpush1.msra.mxu0 0.0
    %157 = vmatprep.mubr.f32.mxu0 0.0
    %158 = vmatmul.mubr.f32.gmra.mrb[0].mxu0 %v60
    %v159 = vpop.f32.mrb[0].mxu0
    %v160 = vadd.f32 0.0, %v159
    %v161 = vpop.f32.mrb[0].mxu0
    %v162 = vadd.f32 0.0, %v161
    %163 = vdwg.mxu0
    %v164 = vld [vmem:[%s2] ss:$2 sm:$0x3]
    %s165 = scalar_lea.vmem %s2, 1
    %v166 = vld [vmem:[%s165] ss:$2 sm:$0x3]
    %v167 = vrot.slane %v160, 4
    %v168 = vadd.f32 %v160, %v167
    %v169 = vrot.slane %v168, 2
    %v170 = vadd.f32 %v168, %v169
    %v171 = vrot.slane %v170, 1
    %v172 = vadd.f32 %v170, %v171
    %v173 = vrot.slane %v162, 4
    %v174 = vadd.f32 %v162, %v173
    %v175 = vrot.slane %v174, 2
    %v176 = vadd.f32 %v174, %v175
    %v177 = vrot.slane %v176, 1
    %v178 = vadd.f32 %v176, %v177
    %v179 = vmul.f32 %v172, 0.125
    %v180 = vmul.f32 %v178, 0.125
    %v181 = vmul.f32 %v160, %v160
    %v182 = vmul.f32 %v162, %v162
    %v183 = vrot.slane %v181, 4
    %v184 = vadd.f32 %v181, %v183
    %v185 = vrot.slane %v184, 2
    %v186 = vadd.f32 %v184, %v185
    %v187 = vrot.slane %v186, 1
    %v188 = vadd.f32 %v186, %v187
    %v189 = vrot.slane %v182, 4
    %v190 = vadd.f32 %v182, %v189
    %v191 = vrot.slane %v190, 2
    %v192 = vadd.f32 %v190, %v191
    %v193 = vrot.slane %v192, 1
    %v194 = vadd.f32 %v192, %v193
    %v195 = vmul.f32 %v188, 0.125
    %v196 = vmul.f32 %v194, 0.125
    %v197 = vmul.f32 %v179, %v179
    %v198 = vmul.f32 %v180, %v180
    %v199 = vsub.f32 %v195, %v197
    %v200 = vsub.f32 %v196, %v198
    %v201 = vmax.f32 %v199, 0.0
    %v202 = vmax.f32 %v200, 0.0
    %v203 = vsub.f32 %v160, %v179
    %v204 = vsub.f32 %v162, %v180
    %v205 = vadd.f32 %v201, 1e-05
    %v206 = vadd.f32 %v202, 1e-05
    %v207 = vrsqrt.pop %v205
    %v208 = vrsqrt.pop %v206
    %v209 = vmul.f32 %v203, %v207
    %v210 = vmul.f32 %v204, %v208
    %v212 = vlaneseq
    %v213 = vshrl.u32 %v212, 7
    %v214 = vsub.s32 0, %v213
    %v215 = vrot.slane %v164, %v214
    %v216 = vlaneseq
    %v217 = vshrl.u32 %v216, 7
    %v218 = vsub.s32 1, %v217
    %v219 = vrot.slane %v164, %v218
    %v222 = vmul.f32 %v209, %v215
    %v223 = vmul.f32 %v210, %v219
    %v225 = vlaneseq
    %v226 = vshrl.u32 %v225, 7
    %v227 = vsub.s32 0, %v226
    %v228 = vrot.slane %v166, %v227
    %v229 = vlaneseq
    %v230 = vshrl.u32 %v229, 7
    %v231 = vsub.s32 1, %v230
    %v232 = vrot.slane %v166, %v231
    %v235 = vadd.f32 %v222, %v228
    %v236 = vadd.f32 %v223, %v232
    %v237 = vmax.f32 %v235, 0.0
    %v238 = vmax.f32 %v236, 0.0
    %v239 = vld [vmem:[#allocation7] sm:$0xff]
    %v240 = vld [vmem:[#allocation7 + $0x8] sm:$0xff]
    %v241 = vld [vmem:[#allocation7 + $0x10] sm:$0xff]
    %v242 = vld [vmem:[#allocation7 + $0x18] sm:$0xff]
    %v243 = vld [vmem:[#allocation7 + $0x20] sm:$0xff]
    %v244 = vld [vmem:[#allocation7 + $0x28] sm:$0xff]
    %v245 = vld [vmem:[#allocation7 + $0x30] sm:$0xff]
    %v246 = vld [vmem:[#allocation7 + $0x38] sm:$0xff]
    %v247 = vld [vmem:[#allocation7 + $0x40] sm:$0xff]
    %v248 = vld [vmem:[#allocation7 + $0x48] sm:$0xff]
    %v249 = vld [vmem:[#allocation7 + $0x50] sm:$0xff]
    %v250 = vld [vmem:[#allocation7 + $0x58] sm:$0xff]
    %v251 = vld [vmem:[#allocation7 + $0x60] sm:$0xff]
    %v252 = vld [vmem:[#allocation7 + $0x68] sm:$0xff]
    %v253 = vld [vmem:[#allocation7 + $0x70] sm:$0xff]
    %v254 = vld [vmem:[#allocation7 + $0x78] sm:$0xff]
    %v255 = vld [vmem:[#allocation7 + $0x80] sm:$0xff]
    %v256 = vld [vmem:[#allocation7 + $0x88] sm:$0xff]
    %v257 = vld [vmem:[#allocation7 + $0x90] sm:$0xff]
    %v258 = vld [vmem:[#allocation7 + $0x98] sm:$0xff]
    %v259 = vld [vmem:[#allocation7 + $0xa0] sm:$0xff]
    %v260 = vld [vmem:[#allocation7 + $0xa8] sm:$0xff]
    %v261 = vld [vmem:[#allocation7 + $0xb0] sm:$0xff]
    %v262 = vld [vmem:[#allocation7 + $0xb8] sm:$0xff]
    %v263 = vld [vmem:[#allocation7 + $0xc0] sm:$0xff]
    %v264 = vld [vmem:[#allocation7 + $0xc8] sm:$0xff]
    %v265 = vld [vmem:[#allocation7 + $0xd0] sm:$0xff]
    %v266 = vld [vmem:[#allocation7 + $0xd8] sm:$0xff]
    %v267 = vld [vmem:[#allocation7 + $0xe0] sm:$0xff]
    %v268 = vld [vmem:[#allocation7 + $0xe8] sm:$0xff]
    %v269 = vld [vmem:[#allocation7 + $0xf0] sm:$0xff]
    %v270 = vld [vmem:[#allocation7 + $0xf8] sm:$0xff]
    %271 = vmatprep.subr.mxu0 0.0
    %272 = vmatpush1.msra.mxu0 %v239
    %273 = vmatprep.subr.mxu0 0.0
    %274 = vmatpush1.msra.mxu0 %v240
    %275 = vmatprep.subr.mxu0 0.0
    %276 = vmatpush1.msra.mxu0 %v241
    %277 = vmatprep.subr.mxu0 0.0
    %278 = vmatpush1.msra.mxu0 %v242
    %279 = vmatprep.subr.mxu0 0.0
    %280 = vmatpush1.msra.mxu0 %v243
    %281 = vmatprep.subr.mxu0 0.0
    %282 = vmatpush1.msra.mxu0 %v244
    %283 = vmatprep.subr.mxu0 0.0
    %284 = vmatpush1.msra.mxu0 %v245
    %285 = vmatprep.subr.mxu0 0.0
    %286 = vmatpush1.msra.mxu0 %v246
    %287 = vmatprep.subr.mxu0 0.0
    %288 = vmatpush1.msra.mxu0 %v247
    %289 = vmatprep.subr.mxu0 0.0
    %290 = vmatpush1.msra.mxu0 %v248
    %291 = vmatprep.subr.mxu0 0.0
    %292 = vmatpush1.msra.mxu0 %v249
    %293 = vmatprep.subr.mxu0 0.0
    %294 = vmatpush1.msra.mxu0 %v250
    %295 = vmatprep.subr.mxu0 0.0
    %296 = vmatpush1.msra.mxu0 %v251
    %297 = vmatprep.subr.mxu0 0.0
    %298 = vmatpush1.msra.mxu0 %v252
    %299 = vmatprep.subr.mxu0 0.0
    %300 = vmatpush1.msra.mxu0 %v253
    %301 = vmatprep.subr.mxu0 0.0
    %302 = vmatpush1.msra.mxu0 %v254
    %303 = vmatprep.subr.mxu0 0.0
    %304 = vmatpush1.msra.mxu0 %v255
    %305 = vmatprep.subr.mxu0 0.0
    %306 = vmatpush1.msra.mxu0 %v256
    %307 = vmatprep.subr.mxu0 0.0
    %308 = vmatpush1.msra.mxu0 %v257
    %309 = vmatprep.subr.mxu0 0.0
    %310 = vmatpush1.msra.mxu0 %v258
    %311 = vmatprep.subr.mxu0 0.0
    %312 = vmatpush1.msra.mxu0 %v259
    %313 = vmatprep.subr.mxu0 0.0
    %314 = vmatpush1.msra.mxu0 %v260
    %315 = vmatprep.subr.mxu0 0.0
    %316 = vmatpush1.msra.mxu0 %v261
    %317 = vmatprep.subr.mxu0 0.0
    %318 = vmatpush1.msra.mxu0 %v262
    %319 = vmatprep.subr.mxu0 0.0
    %320 = vmatpush1.msra.mxu0 %v263
    %321 = vmatprep.subr.mxu0 0.0
    %322 = vmatpush1.msra.mxu0 %v264
    %323 = vmatprep.subr.mxu0 0.0
    %324 = vmatpush1.msra.mxu0 %v265
    %325 = vmatprep.subr.mxu0 0.0
    %326 = vmatpush1.msra.mxu0 %v266
    %327 = vmatprep.subr.mxu0 0.0
    %328 = vmatpush1.msra.mxu0 %v267
    %329 = vmatprep.subr.mxu0 0.0
    %330 = vmatpush1.msra.mxu0 %v268
    %331 = vmatprep.subr.mxu0 0.0
    %332 = vmatpush1.msra.mxu0 %v269
    %333 = vmatprep.subr.mxu0 0.0
    %334 = vmatpush1.msra.mxu0 %v270
    %335 = vmatprep.mubr.f32.mxu0 %v238
    %336 = vmatmul.mubr.f32.gmra.mrb[0].mxu0 %v237
    %v337 = vpop.f32.mrb[0].mxu0
    %v338 = vadd.f32 0.0, %v337
    %v339 = vpop.f32.mrb[0].mxu0
    %340 = vdwg.mxu0
    %v341 = vld [vmem:[%s4] sm:$0x1]
    %v342 = vld [vmem:[%s4 + $0x1] sm:$0x1]
    %v343 = vrot.slane %v338, 4
    %v344 = vadd.f32 %v338, %v343
    %v345 = vrot.slane %v344, 2
    %v346 = vadd.f32 %v344, %v345
    %v347 = vrot.slane %v346, 1
    %v348 = vadd.f32 %v346, %v347
    %v349 = vmul.f32 %v348, 0.125
    %v350 = vmul.f32 %v338, %v338
    %v351 = vrot.slane %v350, 4
    %v352 = vadd.f32 %v350, %v351
    %v353 = vrot.slane %v352, 2
    %v354 = vadd.f32 %v352, %v353
    %v355 = vrot.slane %v354, 1
    %v356 = vadd.f32 %v354, %v355
    %v357 = vmul.f32 %v356, 0.125
    %v358 = vmul.f32 %v349, %v349
    %v359 = vsub.f32 %v357, %v358
    %v360 = vmax.f32 %v359, 0.0
    %v361 = vsub.f32 %v338, %v349
    %v362 = vadd.f32 %v360, 1e-05
    %v363 = vrsqrt.pop %v362
    %v364 = vmul.f32 %v361, %v363
    %v365 = vlaneseq
    %v366 = vshrl.u32 %v365, 7
    %v367 = vsub.s32 0, %v366
    %v368 = vrot.slane %v341, %v367
    %v369 = vmul.f32 %v364, %v368
    %v370 = vlaneseq
    %v371 = vshrl.u32 %v370, 7
    %v372 = vsub.s32 0, %v371
    %v373 = vrot.slane %v342, %v372
    %v374 = vadd.f32 %v369, %v373
    %v375 = vadd.f32 %v60, %v374
    %376 = vst [vmem:[#allocation8] sm:$0xff] %v375
    // Predicated region
    $region34: #{tpu_custom_call.1} parent=1 // pred_check
      _
    $region35: #{tpu_custom_call.1} parent=1 // pred_check_branch
      %378 = sbr.rel (0) target = $region37
    $region36: #{tpu_custom_call.1} parent=1 // pred_region
      %s380 = ssub.s32 128, 128
      %381 = vsyncadd [#allocation4], %s380
      %s383 = sshll.u32 [#allocation8], 4
      %s384 = int_to_ptr.vmem [resolvable:$true] %s383
      %386 = dma.vmem_to_hbm [thread:$0]  %s384, 128, %s5, [#allocation4]
    $region37: #{tpu_custom_call.1} parent=1 // pred_fallthru
      _
    // Predicated region
    $region38: #{tpu_custom_call.1} parent=1 // pred_check
      _
    $region39: #{tpu_custom_call.1} parent=1 // pred_check_branch
      %388 = sbr.rel (0) target = $region41
    $region40: #{tpu_custom_call.1} parent=1 // pred_region
      %389 = dma.done [#allocation4], 128
    $region41: #{tpu_custom_call.1} parent=1 // pred_fallthru
      _
    %390 = vsyncpa [#allocation3], 1
    %391 = vsyncpa [#allocation6], 1
    %392 = vsyncpa [#allocation4], 1

</llo_original>
